<compile_context>
chip_gen: v7x
topology: tpu7x:2x2x1
jax: 0.10.0
libtpu: 0.0.40
codegen_flags: <defaults>
</compile_context>

<pallas_src>
import functools

import jax
import jax.numpy as jnp
from jax.experimental import pallas as pl
from jax.experimental.pallas import tpu as pltpu


def _round_up(x, m):
    return ((x + m - 1) // m) * m


# ----------------------------- Pallas kernels ------------------------------

def _matmul_bias_kernel(a_ref, w_ref, b_ref, o_ref, acc_ref):
    """One (tm, tn) output tile, accumulated (f32) over the K grid axis."""
    k = pl.program_id(2)

    @pl.when(k == 0)
    def _():
        acc_ref[...] = jnp.zeros_like(acc_ref)

    acc_ref[...] += jnp.dot(a_ref[...], w_ref[...],
                            preferred_element_type=jnp.float32)

    @pl.when(k == pl.num_programs(2) - 1)
    def _():
        o_ref[...] = (acc_ref[...] + b_ref[...]).astype(o_ref.dtype)


def _avgpool_kernel(x_ref, p_ref, o_ref):
    # x: (tr, g*2*Wp)  -- each row holds `g` consecutive 2-row bands.
    # p: (g*2*Wp, g*Wo) -- constant block-diagonal pooling matrix (four 0.25
    # entries per output column), so the 2x2 gather + scaling rides the MXU
    # and the stored last dim (g*Wo) stays lane-dense.
    o_ref[...] = jnp.dot(x_ref[...], p_ref[...],
                         preferred_element_type=jnp.float32).astype(o_ref.dtype)


# ------------------------------- wrappers ----------------------------------

@functools.partial(jax.jit, static_argnames=("compute_dtype",))
def conv2d_k3_s2_p1(x_nchw, weight, bias, compute_dtype=jnp.bfloat16):
    """nn.Conv2d(C, C, kernel_size=3, stride=2, padding=1) forward.

    compute_dtype: MXU operand dtype (bf16 by default; pass None for f32).
    Accumulation is always float32 via the VMEM scratch.
    """
    N, C, H, W = x_nchw.shape
    Cout, Cin, KH, KW = weight.shape
    assert Cin == C and KH == 3 and KW == 3
    Ho = (H + 2 - 3) // 2 + 1
    Wo = (W + 2 - 3) // 2 + 1
    M = N * Ho * Wo
    K = C * 9

    out_dt = x_nchw.dtype
    cdt = jnp.dtype(compute_dtype) if compute_dtype is not None else jnp.dtype(out_dt)

    n_pad = _round_up(Cout, 128)                 # lane-dense output stores
    k_pad = _round_up(K, 128)                    # aligned MXU contraction

    # --- glue: NHWC im2col, built directly in the compute dtype ------------
    # TODO(synk): in-kernel tap accumulation (halo'd input blocks) would avoid
    # materializing this (M, k_pad) matrix in HBM entirely; bf16 already
    # halves its footprint and tn covering n_pad keeps it to a single read.
    x_nhwc = jnp.transpose(x_nchw, (0, 2, 3, 1)).astype(cdt)
    xp = jnp.pad(x_nhwc, ((0, 0), (1, 1), (1, 1), (0, 0)))
    taps = [xp[:, kh:kh + 2 * Ho:2, kw:kw + 2 * Wo:2, :]      # (N, Ho, Wo, C)
            for kh in range(3) for kw in range(3)]
    if k_pad > K:
        taps.append(jnp.zeros((N, Ho, Wo, k_pad - K), cdt))
    a = jnp.concatenate(taps, axis=-1).reshape(M, k_pad)      # (M, k_pad)

    # weights -> (K, Cout) with matching (kh, kw, ci) ordering, zero-padded.
    w = jnp.transpose(weight, (2, 3, 1, 0)).reshape(K, Cout).astype(cdt)
    w = jnp.pad(w, ((0, k_pad - K), (0, n_pad - Cout)))
    b = jnp.pad(bias.astype(jnp.float32), (0, n_pad - Cout)).reshape(1, n_pad)

    # --- tile choices: budget-driven, single K step when it fits -----------
    in_b = jnp.dtype(cdt).itemsize
    out_b = jnp.dtype(out_dt).itemsize
    BUDGET = 24 * 1024 * 1024                    # fits v7x's 64 MiB VMEM easily

    tm = min(512, _round_up(M, 8))
    if n_pad <= 512:
        tn = n_pad                               # A stream read exactly once
    elif n_pad % 512 == 0:
        tn = 512
    elif n_pad % 256 == 0:
        tn = 256
    else:
        tn = 128

    def _est(tm_, tn_, tk_):
        # double-buffered A, W, bias, out + f32 accumulator scratch
        return (2 * (tm_ * tk_ + tk_ * tn_) * in_b
                + 2 * tn_ * 4
                + 2 * tm_ * tn_ * out_b
                + tm_ * tn_ * 4)

    nk = k_pad // 128
    tk = 128
    for d in sorted((d for d in range(1, nk + 1) if nk % d == 0), reverse=True):
        if _est(tm, tn, 128 * d) <= BUDGET:
            tk = 128 * d                         # largest K tile under budget
            break

    # v7x: keep >=2 steps on a parallel grid axis so both TensorCores get work.
    if (pl.cdiv(M, tm) * (n_pad // tn)) < 2 and M > 8:
        tm = max(8, _round_up(tm // 2, 8))

    est = _est(tm, tn, tk)
    cp_kwargs = dict(dimension_semantics=("parallel", "parallel", "arbitrary"))
    if est > 8 * 1024 * 1024:
        # explicit scoped-VMEM budget (v5e default is only 16 MiB; v7x physical
        # VMEM is 64 MiB so 48 MiB leaves headroom on every generation).
        cp_kwargs["vmem_limit_bytes"] = 48 * 1024 * 1024

    grid = (pl.cdiv(M, tm), n_pad // tn, k_pad // tk)
    out = pl.pallas_call(
        _matmul_bias_kernel,
        out_shape=jax.ShapeDtypeStruct((M, n_pad), out_dt),
        grid=grid,
        in_specs=[
            pl.BlockSpec((tm, tk), lambda i, j, k: (i, k)),
            pl.BlockSpec((tk, tn), lambda i, j, k: (k, j)),
            pl.BlockSpec((1, tn), lambda i, j, k: (0, j)),
        ],
        out_specs=pl.BlockSpec((tm, tn), lambda i, j, k: (i, j)),
        scratch_shapes=[pltpu.VMEM((tm, tn), jnp.float32)],
        compiler_params=pltpu.CompilerParams(**cp_kwargs),
    )(a, w, b)

    out = out[:, :Cout].reshape(N, Ho, Wo, Cout)
    # TODO(synk): in a full NHWC network this final transpose (and the input
    # transpose above) would be folded into the neighbouring layers.
    return jnp.transpose(out, (0, 3, 1, 2))


@jax.jit
def avg_pool_2x2(x_nchw):
    """2x2 / stride-2 average pool (NCHW), floor semantics for odd H/W.

    # TODO(synk): the reference `nn.AvgPool2d(stride=2)` is invalid PyTorch
    # (kernel_size is required); we implement the intended
    # AvgPool2d(kernel_size=2, stride=2) semantics here.
    """
    N, C, H, W = x_nchw.shape
    Ho, Wo = H // 2, W // 2
    Hp, Wp = 2 * Ho, 2 * Wo
    x = x_nchw[:, :, :Hp, :Wp]
    R = N * C * Ho                               # number of 2-row bands

    # Group g consecutive bands per matmul row so the stored last dim (g*Wo)
    # is lane-dense (>=128 -> unmasked stores). Bands are contiguous in NCHW,
    # so this grouping is a free reshape (no extra HBM pass).
    target = max(1, -(-128 // Wo))               # ceil(128 / Wo)
    g = 1
    while g < target and R % (2 * g) == 0 and (2 * g) * 2 * Wp <= 4096:
        g *= 2
    Rg = R // g
    rows = x.reshape(Rg, g * 2 * Wp)

    # block-diagonal pooling matrix:
    # out[:, gi*Wo+wo] = 0.25*(x[gi, 2wo] + x[gi, 2wo+1] + x[gi, Wp+2wo] + x[gi, Wp+2wo+1])
    i_idx = jnp.arange(g * 2 * Wp)
    j_idx = jnp.arange(g * Wo)
    gi = i_idx // (2 * Wp)
    wi = (i_idx % (2 * Wp)) % Wp
    gj = j_idx // Wo
    wj = j_idx % Wo
    pmat = (((gi[:, None] == gj[None, :]) & ((wi[:, None] // 2) == wj[None, :]))
            .astype(x.dtype) * 0.25)

    # Row tile sized by bytes (~2 MiB input block) rather than a fixed cap.
    row_bytes = g * 2 * Wp * jnp.dtype(x.dtype).itemsize
    tr = max(8, ((2 * 1024 * 1024) // row_bytes) // 8 * 8)
    tr = min(tr, _round_up(Rg, 8))
    if tr >= Rg:
        tr = Rg

    out = pl.pallas_call(
        _avgpool_kernel,
        out_shape=jax.ShapeDtypeStruct((Rg, g * Wo), x.dtype),
        grid=(pl.cdiv(Rg, tr),),
        in_specs=[
            pl.BlockSpec((tr, g * 2 * Wp), lambda i: (i, 0)),
            pl.BlockSpec((g * 2 * Wp, g * Wo), lambda i: (0, 0)),
        ],
        out_specs=pl.BlockSpec((tr, g * Wo), lambda i: (i, 0)),
        compiler_params=pltpu.CompilerParams(
            dimension_semantics=("parallel",)),
    )(rows, pmat)
    return out.reshape(N, C, Ho, Wo)


class Downsample:
    """JAX/Pallas port of the PyTorch Downsample module."""

    def __init__(self, channels, use_conv, key):
        self.use_conv = use_conv
        self.channels = channels
        if use_conv:
            kw, kb = jax.random.split(key)
            fan_in = channels * 3 * 3
            bound = 1.0 / (fan_in ** 0.5)  # PyTorch Conv2d default init range
            self.weight = jax.random.uniform(
                kw, (channels, channels, 3, 3), jnp.float32, -bound, bound)
            self.bias = jax.random.uniform(
                kb, (channels,), jnp.float32, -bound, bound)

    def __call__(self, x):
        if self.use_conv:
            # bf16 MXU operands by default (f32 accumulation in the kernel).
            return conv2d_k3_s2_p1(x, self.weight, self.bias,
                                   compute_dtype=jnp.bfloat16)
        return avg_pool_2x2(x)


# --------------------------------- main -------------------------------------

if __name__ == "__main__":
    key = jax.random.PRNGKey(0)
    kx, kp = jax.random.split(key)

    N, C, H, W = 2, 4, 16, 16
    x = jax.random.normal(kx, (N, C, H, W), jnp.float32)

    # ----- conv path (use_conv=True) ----------------------------------------
    down_conv = Downsample(C, use_conv=True, key=kp)
    y_conv = jax.block_until_ready(down_conv(x))
    assert y_conv.shape == (N, C, H // 2, W // 2), y_conv.shape

    # reference: f32 XLA conv on bf16-rounded inputs (kernel uses bf16 MXU
    # operands with f32 accumulation, so only summation order differs).
    xb = x.astype(jnp.bfloat16).astype(jnp.float32)
    wb = down_conv.weight.astype(jnp.bfloat16).astype(jnp.float32)
    ref = jax.lax.conv_general_dilated(
        xb, wb, window_strides=(2, 2), padding=((1, 1), (1, 1)),
        dimension_numbers=("NCHW", "OIHW", "NCHW"),
    ) + down_conv.bias.reshape(1, -1, 1, 1)
    assert jnp.allclose(y_conv, ref, atol=2e-3, rtol=2e-3), \
        float(jnp.max(jnp.abs(y_conv - ref)))

    # odd spatial size -> exercises partial M tiles (M % tm != 0)
    x_odd = jax.random.normal(jax.random.PRNGKey(1), (2, 4, 10, 10), jnp.float32)
    y_odd = jax.block_until_ready(down_conv(x_odd))
    xob = x_odd.astype(jnp.bfloat16).astype(jnp.float32)
    ref_odd = jax.lax.conv_general_dilated(
        xob, wb, window_strides=(2, 2), padding=((1, 1), (1, 1)),
        dimension_numbers=("NCHW", "OIHW", "NCHW"),
    ) + down_conv.bias.reshape(1, -1, 1, 1)
    assert y_odd.shape == (2, 4, 5, 5), y_odd.shape
    assert jnp.allclose(y_odd, ref_odd, atol=2e-3, rtol=2e-3), \
        float(jnp.max(jnp.abs(y_odd - ref_odd)))

    # ----- pool path (use_conv=False) ----------------------------------------
    down_pool = Downsample(C, use_conv=False, key=kp)
    y_pool = jax.block_until_ready(down_pool(x))
    assert y_pool.shape == (N, C, H // 2, W // 2), y_pool.shape
    ref_pool = x.reshape(N, C, H // 2, 2, W // 2, 2).mean(axis=(3, 5))
    assert jnp.allclose(y_pool, ref_pool, atol=1e-5, rtol=1e-5)

    # odd spatial size (floor semantics) and non-power-of-two row count
    x3 = jax.random.normal(jax.random.PRNGKey(2), (1, 3, 10, 10), jnp.float32)
    y3 = jax.block_until_ready(avg_pool_2x2(x3))
    ref3 = x3[:, :, :10, :10].reshape(1, 3, 5, 2, 5, 2).mean(axis=(3, 5))
    assert y3.shape == (1, 3, 5, 5), y3.shape
    assert jnp.allclose(y3, ref3, atol=1e-5, rtol=1e-5)

    print("KERNEL_OK")
</pallas_src>

<mosaic_0001>
module attributes {stable_mosaic.version = 11 : i64} {
  func.func @_matmul_bias_kernel(%arg0: i32, %arg1: i32, %arg2: i32, %arg3: memref<64x128xbf16, #tpu.memory_space<vmem>>, %arg4: memref<128x128xbf16, #tpu.memory_space<vmem>>, %arg5: memref<1x128xf32, #tpu.memory_space<vmem>>, %arg6: memref<64x128xf32, #tpu.memory_space<vmem>>, %arg7: memref<64x128xf32, #tpu.memory_space<vmem>>) attributes {dimension_semantics = [#tpu.dimension_semantics<parallel>, #tpu.dimension_semantics<parallel>, #tpu.dimension_semantics<arbitrary>], iteration_bounds = array<i64: 2, 1, 1>, scalar_prefetch = 0 : i64, scratch_operands = 1 : i64, tpu.core_type = #tpu.core_type<tc>, window_params = [{transform_indices = @transform_0, window_bounds = array<i64: 64, 128>}, {transform_indices = @transform_1, window_bounds = array<i64: 128, 128>}, {transform_indices = @transform_2, window_bounds = array<i64: 1, 128>}, {transform_indices = @transform_3, window_bounds = array<i64: 64, 128>}]} {
    %c0_i32 = arith.constant 0 : i32
    %0 = arith.cmpi eq, %arg2, %c0_i32 : i32
    %1 = arith.extui %0 : i1 to i32
    %c0_i32_0 = arith.constant 0 : i32
    %2 = arith.cmpi ne, %1, %c0_i32_0 : i32
    scf.if %2 {
      %cst_10 = arith.constant 0.000000e+00 : f32
      %12 = vector.broadcast %cst_10 : f32 to vector<64x128xf32>
      %c0_11 = arith.constant 0 : index
      %c0_12 = arith.constant 0 : index
      %13 = vector.load %arg7[%c0_11, %c0_12] : memref<64x128xf32, #tpu.memory_space<vmem>>, vector<64x128xf32>
      tpu.vector_store %arg7[%c0_11, %c0_12], %12 {strides = array<i32>} : memref<64x128xf32, #tpu.memory_space<vmem>>, vector<64x128xf32>,
    } else {
    }
    %c0 = arith.constant 0 : index
    %c0_1 = arith.constant 0 : index
    %3 = vector.load %arg7[%c0, %c0_1] : memref<64x128xf32, #tpu.memory_space<vmem>>, vector<64x128xf32>
    %c0_2 = arith.constant 0 : index
    %c0_3 = arith.constant 0 : index
    %4 = vector.load %arg3[%c0_2, %c0_3] : memref<64x128xbf16, #tpu.memory_space<vmem>>, vector<64x128xbf16>
    %c0_4 = arith.constant 0 : index
    %c0_5 = arith.constant 0 : index
    %5 = vector.load %arg4[%c0_4, %c0_5] : memref<128x128xbf16, #tpu.memory_space<vmem>>, vector<128x128xbf16>
    %cst = arith.constant dense<0.000000e+00> : vector<64x128xf32>
    %6 = tpu.matmul %4, %5, %cst {dimension_numbers = #tpu.dot_dimension_numbers<[1], [0], [0], [1], [0, 0, 1, 1], [], []>} : vector<64x128xbf16>, vector<128x128xbf16>, vector<64x128xf32> -> vector<64x128xf32>
    %7 = arith.addf %3, %6 : vector<64x128xf32>
    %c0_6 = arith.constant 0 : index
    %c0_7 = arith.constant 0 : index
    %8 = vector.load %arg7[%c0_6, %c0_7] : memref<64x128xf32, #tpu.memory_space<vmem>>, vector<64x128xf32>
    tpu.vector_store %arg7[%c0_6, %c0_7], %7 {strides = array<i32>} : memref<64x128xf32, #tpu.memory_space<vmem>>, vector<64x128xf32>,
    %c0_i32_8 = arith.constant 0 : i32
    %9 = arith.cmpi eq, %arg2, %c0_i32_8 : i32
    %10 = arith.extui %9 : i1 to i32
    %c0_i32_9 = arith.constant 0 : i32
    %11 = arith.cmpi ne, %10, %c0_i32_9 : i32
    scf.if %11 {
      %c0_10 = arith.constant 0 : index
      %c0_11 = arith.constant 0 : index
      %12 = vector.load %arg7[%c0_10, %c0_11] : memref<64x128xf32, #tpu.memory_space<vmem>>, vector<64x128xf32>
      %c0_12 = arith.constant 0 : index
      %c0_13 = arith.constant 0 : index
      %13 = vector.load %arg5[%c0_12, %c0_13] : memref<1x128xf32, #tpu.memory_space<vmem>>, vector<1x128xf32>
      %14 = vector.broadcast %13 : vector<1x128xf32> to vector<64x128xf32>
      %15 = arith.addf %12, %14 : vector<64x128xf32>
      %c0_14 = arith.constant 0 : index
      %c0_15 = arith.constant 0 : index
      %16 = vector.load %arg6[%c0_14, %c0_15] : memref<64x128xf32, #tpu.memory_space<vmem>>, vector<64x128xf32>
      tpu.vector_store %arg6[%c0_14, %c0_15], %15 {strides = array<i32>} : memref<64x128xf32, #tpu.memory_space<vmem>>, vector<64x128xf32>,
    } else {
    }
    return
  }
  func.func @transform_0(%arg0: i32, %arg1: i32, %arg2: i32) -> (i32, i32) {
    %c0_i32 = arith.constant 0 : i32
    return %arg0, %arg2 : i32, i32
  }
  func.func @transform_1(%arg0: i32, %arg1: i32, %arg2: i32) -> (i32, i32) {
    %c0_i32 = arith.constant 0 : i32
    return %arg2, %arg1 : i32, i32
  }
  func.func @transform_2(%arg0: i32, %arg1: i32, %arg2: i32) -> (i32, i32) {
    %c0_i32 = arith.constant 0 : i32
    %c0_i32_0 = arith.constant 0 : i32
    return %c0_i32, %arg1 : i32, i32
  }
  func.func @transform_3(%arg0: i32, %arg1: i32, %arg2: i32) -> (i32, i32) {
    %c0_i32 = arith.constant 0 : i32
    return %arg0, %arg1 : i32, i32
  }
}

</mosaic_0001>

<llo_original>
// kernel: conv2d_k3_s2_p1.1
$region0: #{conv2d_k3_s2_p1.1}
  #allocation0 [shape = 'u32[]', space=smem, size = 0x4, offset = 0x4, fixed_abs, tag = 'smem constant byte address 0x4 - core index']
  #allocation1 [shape = 'u32[144,128]{1,0:T(1,128)}', space=vmem, size = 0x12000, scoped, tag = 'internal scratch']
  #allocation2 [shape = 'f32[64,128]{1,0:T(8,128)}', space=vmem, size = 0x8000, scoped, tag = 'scratch operand']
  %s0 = inlined_call_operand.vmem [shape: bf16[128,128], index: 0, kind: input, shape index: {}]
  %s1 = inlined_call_operand.vmem [shape: bf16[128,128], index: 1, kind: input, shape index: {}]
  %s2 = inlined_call_operand.vmem [shape: f32[1,128], index: 2, kind: input, shape index: {}]
  %s3 = inlined_call_operand.vmem [shape: f32[128,128], index: 3, kind: output, shape index: {}]
  %s4 = sld [smem:[#allocation0]]
  $region53: #{conv2d_k3_s2_p1.1} parent=0
    _
  %s6 = ssub.s32 1, %s4
  %s7 = scalar_select 0, %s6, %s4
  loop: start=0, step=1, limit=4
  $region2: #{conv2d_k3_s2_p1.1} parent=0 // loop_pre_header
    _
  $region3: #{conv2d_k3_s2_p1.1} parent=0 // loop_header
    %s9 = sphi 0, %s13
    %p10 = scmp.ge.s32.totalorder %s9, 4
    %s16 = sphi 0, %s35
    %s17 = sphi 0, %s31
    %s18 = sphi 0, %s27
    %s19 = sphi 0, %s16
    %s20 = sphi 0, %s17
    %s21 = sphi 0, %s18
    %s22 = sphi 0, %s19
    %s23 = sphi 0, %s20
    %s24 = sphi 0, %s21
    %s40 = sphi 0, %s42
    %s43 = sphi 0, %s40
    %s44 = sphi 0, %s43
    %s60 = sphi 0, %s44
    %s68 = sphi 0, %s70
    %s71 = sphi 0, %s68
    %s72 = sphi 0, %s71
    %s88 = sphi 0, %s72
    %s94 = sphi 0, %s96
    %s97 = sphi 0, %s94
    %s98 = sphi 0, %s97
    %s114 = sphi 0, %s98
    %s122 = sphi 0, %s124
    %s125 = sphi 0, %s122
    %s126 = sphi 0, %s125
    %s142 = sphi 0, %s126
  $region4: #{conv2d_k3_s2_p1.1} parent=0 // loop_header_branch
    %12 = sbr.rel (%p10) target = $region8
  $region5: #{conv2d_k3_s2_p1.1} parent=0 // loop_body
    %s14 = ssub.s32 %s9, 1
    %s15 = ssub.s32 %s9, 2
    %s25 = sadd.s32 1, %s18
    %p26 = scmp.ge.s32.totalorder %s25, 1
    %s27 = scalar_select %p26, 0, %s25
    %s28 = sadd.s32 1, %s17
    %s29 = scalar_select %p26, %s28, %s17
    %p30 = scmp.ge.s32.totalorder %s29, 1
    %s31 = scalar_select %p30, 0, %s29
    %s32 = sadd.s32 1, %s16
    %s33 = scalar_select %p30, %s32, %s16
    %p34 = scmp.ge.s32.totalorder %s33, 2
    %s35 = scalar_select %p34, 0, %s33
    %s36 = ssub.s32 %s16, %s35
    %s37 = ssub.s32 %s18, %s27
    %s38 = sor.u32 %s36, %s37
    %p39 = scmp.eq.s32.totalorder %s38, 0
    %s41 = sadd.s32 %s40, 1
    %s42 = scalar_select %p39, %s40, %s41
    %p45 = pneg %p39
    %p46 = scmp.eq.s32.totalorder %s9, 1
    %p47 = por %p45, %p46
    %p48 = scmp.ne.s32.totalorder %s40, %s43
    %p49 = scmp.eq.s32.totalorder %s9, 0
    %p50 = por %p48, %p49
    %p51 = scmp.ne.s32.totalorder %s40, %s43
    %p52 = scmp.eq.s32.totalorder %s14, 1
    %p53 = por %p51, %p52
    %p54 = scmp.ne.s32.totalorder %s43, %s44
    %p55 = scmp.eq.s32.totalorder %s14, 0
    %p56 = por %p54, %p55
    %p57 = scmp.ne.s32.totalorder %s43, %s44
    %p58 = scmp.eq.s32.totalorder %s15, 1
    %p59 = por %p57, %p58
    %p61 = scmp.ne.s32.totalorder %s44, %s60
    %p62 = scmp.eq.s32.totalorder %s15, 0
    %p63 = por %p61, %p62
    %s64 = ssub.s32 %s18, %s27
    %s65 = ssub.s32 %s17, %s31
    %s66 = sor.u32 %s64, %s65
    %p67 = scmp.eq.s32.totalorder %s66, 0
    %s69 = sadd.s32 %s68, 1
    %s70 = scalar_select %p67, %s68, %s69
    %p73 = pneg %p67
    %p74 = scmp.eq.s32.totalorder %s9, 1
    %p75 = por %p73, %p74
    %p76 = scmp.ne.s32.totalorder %s68, %s71
    %p77 = scmp.eq.s32.totalorder %s9, 0
    %p78 = por %p76, %p77
    %p79 = scmp.ne.s32.totalorder %s68, %s71
    %p80 = scmp.eq.s32.totalorder %s14, 1
    %p81 = por %p79, %p80
    %p82 = scmp.ne.s32.totalorder %s71, %s72
    %p83 = scmp.eq.s32.totalorder %s14, 0
    %p84 = por %p82, %p83
    %p85 = scmp.ne.s32.totalorder %s71, %s72
    %p86 = scmp.eq.s32.totalorder %s15, 1
    %p87 = por %p85, %p86
    %p89 = scmp.ne.s32.totalorder %s72, %s88
    %p90 = scmp.eq.s32.totalorder %s15, 0
    %p91 = por %p89, %p90
    %s92 = ssub.s32 %s17, %s31
    %p93 = scmp.eq.s32.totalorder %s92, 0
    %s95 = sadd.s32 %s94, 1
    %s96 = scalar_select %p93, %s94, %s95
    %p99 = pneg %p93
    %p100 = scmp.eq.s32.totalorder %s9, 1
    %p101 = por %p99, %p100
    %p102 = scmp.ne.s32.totalorder %s94, %s97
    %p103 = scmp.eq.s32.totalorder %s9, 0
    %p104 = por %p102, %p103
    %p105 = scmp.ne.s32.totalorder %s94, %s97
    %p106 = scmp.eq.s32.totalorder %s14, 1
    %p107 = por %p105, %p106
    %p108 = scmp.ne.s32.totalorder %s97, %s98
    %p109 = scmp.eq.s32.totalorder %s14, 0
    %p110 = por %p108, %p109
    %p111 = scmp.ne.s32.totalorder %s97, %s98
    %p112 = scmp.eq.s32.totalorder %s15, 1
    %p113 = por %p111, %p112
    %p115 = scmp.ne.s32.totalorder %s98, %s114
    %p116 = scmp.eq.s32.totalorder %s15, 0
    %p117 = por %p115, %p116
    %s118 = ssub.s32 %s16, %s35
    %s119 = ssub.s32 %s17, %s31
    %s120 = sor.u32 %s118, %s119
    %p121 = scmp.eq.s32.totalorder %s120, 0
    %s123 = sadd.s32 %s122, 1
    %s124 = scalar_select %p121, %s122, %s123
    %p127 = pneg %p121
    %p128 = scmp.eq.s32.totalorder %s9, 1
    %p129 = por %p127, %p128
    %p130 = scmp.ne.s32.totalorder %s122, %s125
    %p131 = scmp.eq.s32.totalorder %s9, 0
    %p132 = por %p130, %p131
    %p133 = scmp.ne.s32.totalorder %s122, %s125
    %p134 = scmp.eq.s32.totalorder %s14, 1
    %p135 = por %p133, %p134
    %p136 = scmp.ne.s32.totalorder %s125, %s126
    %p137 = scmp.eq.s32.totalorder %s14, 0
    %p138 = por %p136, %p137
    %p139 = scmp.ne.s32.totalorder %s125, %s126
    %p140 = scmp.eq.s32.totalorder %s15, 1
    %p141 = por %p139, %p140
    %p143 = scmp.ne.s32.totalorder %s126, %s142
    %p144 = scmp.eq.s32.totalorder %s15, 0
    %p145 = por %p143, %p144
    %p146 = scmp.le.s32.totalorder 1, %s9
    %p147 = scmp.lt.s32.totalorder %s9, 3
    %p148 = pnand %p146, %p147
    %p149 = pneg %p148
    // Predicated region
    $region9: #{conv2d_k3_s2_p1.1} parent=5 // pred_check
      _
    $region10: #{conv2d_k3_s2_p1.1} parent=5 // pred_check_branch
      %151 = sbr.rel (%p148) target = $region12
    $region11: #{conv2d_k3_s2_p1.1} parent=5 // pred_region
      %s152 = ssub.s32 %s9, 1
      // Predicated region
      $region13: #{conv2d_k3_s2_p1.1} parent=11 // pred_check
        %p153 = pneg %p84
      $region14: #{conv2d_k3_s2_p1.1} parent=11 // pred_check_branch
        %155 = sbr.rel (%p153) target = $region16
      $region15: #{conv2d_k3_s2_p1.1} parent=11 // pred_region
        %s156 = smul.u32 16, %s21
        %p157 = scmp.lt.s32.totalorder %s156, 15
        %s158 = scalar_select %p157, %s156, 15
        %p159 = scmp.lt.s32.totalorder %s20, 0
        %s160 = scalar_select %p159, %s20, 0
        %s161 = sadd.s32 %s160, %s158
        %s162 = smul.addr %s161, 4
        %s163 = scalar_lea.vmem %s1, %s162
        %s164 = smul.u32 16, %s21
      $region16: #{conv2d_k3_s2_p1.1} parent=11 // pred_fallthru
        _
      // Predicated region
      $region17: #{conv2d_k3_s2_p1.1} parent=11 // pred_check
        %p165 = pneg %p110
      $region18: #{conv2d_k3_s2_p1.1} parent=11 // pred_check_branch
        %167 = sbr.rel (%p165) target = $region20
      $region19: #{conv2d_k3_s2_p1.1} parent=11 // pred_region
        %p168 = scmp.lt.s32.totalorder %s20, 0
        %s169 = scalar_select %p168, %s20, 0
        %s170 = scalar_lea.vmem %s2, %s169
      $region20: #{conv2d_k3_s2_p1.1} parent=11 // pred_fallthru
        _
    $region12: #{conv2d_k3_s2_p1.1} parent=5 // pred_fallthru
      _
    %p171 = scmp.lt.s32.totalorder %s9, 2
    // Predicated region
    $region21: #{conv2d_k3_s2_p1.1} parent=5 // pred_check
      %p172 = pneg %p171
    $region22: #{conv2d_k3_s2_p1.1} parent=5 // pred_check_branch
      %174 = sbr.rel (%p172) target = $region24
    $region23: #{conv2d_k3_s2_p1.1} parent=5 // pred_region
      // Predicated region
      $region25: #{conv2d_k3_s2_p1.1} parent=23 // pred_check
        %p175 = pneg %p50
      $region26: #{conv2d_k3_s2_p1.1} parent=23 // pred_check_branch
        %177 = sbr.rel (%p175) target = $region28
      $region27: #{conv2d_k3_s2_p1.1} parent=23 // pred_region
        %s178 = smul.u32 8, %s16
        %p179 = scmp.lt.s32.totalorder %s178, 15
        %s180 = scalar_select %p179, %s178, 15
        %p181 = scmp.lt.s32.totalorder %s18, 0
        %s182 = scalar_select %p181, %s18, 0
        %s183 = sadd.s32 %s182, %s180
        %s184 = smul.addr %s183, 4
        %s185 = scalar_lea.vmem %s0, %s184
        %s186 = smul.u32 8, %s16
      $region28: #{conv2d_k3_s2_p1.1} parent=23 // pred_fallthru
        _
    $region24: #{conv2d_k3_s2_p1.1} parent=5 // pred_fallthru
      _
    %p187 = scmp.le.s32.totalorder 1, %s9
    %p188 = scmp.lt.s32.totalorder %s9, 3
    %p189 = pnand %p187, %p188
    %p190 = pneg %p189
    // Predicated region
    $region29: #{conv2d_k3_s2_p1.1} parent=5 // pred_check
      _
    $region30: #{conv2d_k3_s2_p1.1} parent=5 // pred_check_branch
      %192 = sbr.rel (%p189) target = $region32
    $region31: #{conv2d_k3_s2_p1.1} parent=5 // pred_region
      %s193 = ssub.s32 %s9, 1
      %s194 = smul.u32 8, %s19
      %p195 = scmp.lt.s32.totalorder %s194, 15
      %s196 = scalar_select %p195, %s194, 15
      %p197 = scmp.lt.s32.totalorder %s21, 0
      %s198 = scalar_select %p197, %s21, 0
      %s199 = sadd.s32 %s198, %s196
      %s200 = smul.addr %s199, 4
      %s201 = scalar_lea.vmem %s0, %s200
      %p202 = pneg %p56
      %p203 = pneg %p53
      %s204 = smul.u32 16, %s21
      %p205 = scmp.lt.s32.totalorder %s204, 15
      %s206 = scalar_select %p205, %s204, 15
      %p207 = scmp.lt.s32.totalorder %s20, 0
      %s208 = scalar_select %p207, %s20, 0
      %s209 = sadd.s32 %s208, %s206
      %s210 = smul.addr %s209, 4
      %s211 = scalar_lea.vmem %s1, %s210
      %p212 = pneg %p84
      %p213 = pneg %p81
      %p214 = scmp.lt.s32.totalorder %s20, 0
      %s215 = scalar_select %p214, %s20, 0
      %s216 = scalar_lea.vmem %s2, %s215
      %p217 = pneg %p110
      %p218 = pneg %p107
      %p219 = pneg %p138
      %p220 = pneg %p135
      %s221 = smul.u32 8, %s19
      %p222 = scmp.lt.s32.totalorder %s221, 15
      %s223 = scalar_select %p222, %s221, 15
      %p224 = scmp.lt.s32.totalorder %s20, 0
      %s225 = scalar_select %p224, %s20, 0
      %s226 = sadd.s32 %s225, %s223
      %s227 = smul.addr %s226, 8
      %s228 = scalar_lea.vmem %s3, %s227
      %s229 = smul.u32 8, %s19
      %p230 = scmp.lt.s32.totalorder %s229, 15
      %s231 = scalar_select %p230, %s229, 15
      %p232 = scmp.lt.s32.totalorder %s21, 0
      %s233 = scalar_select %p232, %s21, 0
      %s234 = sadd.s32 %s233, %s231
      %s235 = smul.addr %s234, 4
      %s236 = scalar_lea.vmem %s0, %s235
      %s237 = smul.u32 8, %s19
      %s238 = smul.u32 16, %s21
      %p239 = scmp.lt.s32.totalorder %s238, 15
      %s240 = scalar_select %p239, %s238, 15
      %p241 = scmp.lt.s32.totalorder %s20, 0
      %s242 = scalar_select %p241, %s20, 0
      %s243 = sadd.s32 %s242, %s240
      %s244 = smul.addr %s243, 4
      %s245 = scalar_lea.vmem %s1, %s244
      %s246 = smul.u32 16, %s21
      %p247 = scmp.lt.s32.totalorder %s20, 0
      %s248 = scalar_select %p247, %s20, 0
      %s249 = scalar_lea.vmem %s2, %s248
      %s250 = smul.u32 8, %s19
      %p251 = scmp.lt.s32.totalorder %s250, 15
      %s252 = scalar_select %p251, %s250, 15
      %p253 = scmp.lt.s32.totalorder %s20, 0
      %s254 = scalar_select %p253, %s20, 0
      %s255 = sadd.s32 %s254, %s252
      %s256 = smul.addr %s255, 8
      %s257 = scalar_lea.vmem %s3, %s256
      %s258 = smul.u32 8, %s19
      %p260 = scmp.eq.s32.totalorder %s21, 0
      // Predicated region
      $region33: #{conv2d_k3_s2_p1.1} parent=31 // pred_check
        %p261 = pneg %p260
      $region34: #{conv2d_k3_s2_p1.1} parent=31 // pred_check_branch
        %263 = sbr.rel (%p261) target = $region36
      $region35: #{conv2d_k3_s2_p1.1} parent=31 // pred_region
        %264 = vst [vmem:[#allocation2] sm:$0xff] 0.0
        %265 = vst [vmem:[#allocation2 + $0x8] sm:$0xff] 0.0
        %266 = vst [vmem:[#allocation2 + $0x10] sm:$0xff] 0.0
        %267 = vst [vmem:[#allocation2 + $0x18] sm:$0xff] 0.0
        %268 = vst [vmem:[#allocation2 + $0x20] sm:$0xff] 0.0
        %269 = vst [vmem:[#allocation2 + $0x28] sm:$0xff] 0.0
        %270 = vst [vmem:[#allocation2 + $0x30] sm:$0xff] 0.0
        %271 = vst [vmem:[#allocation2 + $0x38] sm:$0xff] 0.0
      $region36: #{conv2d_k3_s2_p1.1} parent=31 // pred_fallthru
        _
      %v272 = vld [vmem:[#allocation2] sm:$0xff]
      %v273 = vld [vmem:[#allocation2 + $0x8] sm:$0xff]
      %v274 = vld [vmem:[#allocation2 + $0x10] sm:$0xff]
      %v275 = vld [vmem:[#allocation2 + $0x18] sm:$0xff]
      %v276 = vld [vmem:[#allocation2 + $0x20] sm:$0xff]
      %v277 = vld [vmem:[#allocation2 + $0x28] sm:$0xff]
      %v278 = vld [vmem:[#allocation2 + $0x30] sm:$0xff]
      %v279 = vld [vmem:[#allocation2 + $0x38] sm:$0xff]
      %v280 = vld [vmem:[%s236] sm:$0xf]
      %v281 = vld [vmem:[%s236 + $0x4] sm:$0xf]
      %v282 = vld [vmem:[%s236 + $0x8] sm:$0xf]
      %v283 = vld [vmem:[%s236 + $0xc] sm:$0xf]
      %v284 = vld [vmem:[%s236 + $0x10] sm:$0xf]
      %v285 = vld [vmem:[%s236 + $0x14] sm:$0xf]
      %v286 = vld [vmem:[%s236 + $0x18] sm:$0xf]
      %v287 = vld [vmem:[%s236 + $0x1c] sm:$0xf]
      %v288 = vld [vmem:[%s245] sm:$0xf]
      %v289 = vld [vmem:[%s245 + $0x4] sm:$0xf]
      %v290 = vld [vmem:[%s245 + $0x8] sm:$0xf]
      %v291 = vld [vmem:[%s245 + $0xc] sm:$0xf]
      %v292 = vld [vmem:[%s245 + $0x10] sm:$0xf]
      %v293 = vld [vmem:[%s245 + $0x14] sm:$0xf]
      %v294 = vld [vmem:[%s245 + $0x18] sm:$0xf]
      %v295 = vld [vmem:[%s245 + $0x1c] sm:$0xf]
      %v296 = vld [vmem:[%s245 + $0x20] sm:$0xf]
      %v297 = vld [vmem:[%s245 + $0x24] sm:$0xf]
      %v298 = vld [vmem:[%s245 + $0x28] sm:$0xf]
      %v299 = vld [vmem:[%s245 + $0x2c] sm:$0xf]
      %v300 = vld [vmem:[%s245 + $0x30] sm:$0xf]
      %v301 = vld [vmem:[%s245 + $0x34] sm:$0xf]
      %v302 = vld [vmem:[%s245 + $0x38] sm:$0xf]
      %v303 = vld [vmem:[%s245 + $0x3c] sm:$0xf]
      %v312 = vunpack.c.l.b16 %v280
      %v313 = vunpack.c.l.b16 %v281
      %v314 = vunpack.c.l.b16 %v282
      %v315 = vunpack.c.l.b16 %v283
      %v316 = vunpack.c.l.b16 %v284
      %v317 = vunpack.c.l.b16 %v285
      %v318 = vunpack.c.l.b16 %v286
      %v319 = vunpack.c.l.b16 %v287
      %v320 = vpack.c.b16 %v313, %v312
      %v321 = vpack.c.b16 %v315, %v314
      %v322 = vpack.c.b16 %v317, %v316
      %v323 = vpack.c.b16 %v319, %v318
      %v344 = vunpack.c.l.b16 %v288
      %v345 = vunpack.c.l.b16 %v289
      %v346 = vunpack.c.l.b16 %v290
      %v347 = vunpack.c.l.b16 %v291
      %v348 = vunpack.c.l.b16 %v292
      %v349 = vunpack.c.l.b16 %v293
      %v350 = vunpack.c.l.b16 %v294
      %v351 = vunpack.c.l.b16 %v295
      %v352 = vunpack.c.l.b16 %v296
      %v353 = vunpack.c.l.b16 %v297
      %v354 = vunpack.c.l.b16 %v298
      %v355 = vunpack.c.l.b16 %v299
      %v356 = vunpack.c.l.b16 %v300
      %v357 = vunpack.c.l.b16 %v301
      %v358 = vunpack.c.l.b16 %v302
      %v359 = vunpack.c.l.b16 %v303
      %v360 = vpack.c.b16 %v345, %v344
      %v361 = vpack.c.b16 %v347, %v346
      %v362 = vpack.c.b16 %v349, %v348
      %v363 = vpack.c.b16 %v351, %v350
      %v364 = vpack.c.b16 %v353, %v352
      %v365 = vpack.c.b16 %v355, %v354
      %v366 = vpack.c.b16 %v357, %v356
      %v367 = vpack.c.b16 %v359, %v358
      %376 = vmatprep.subr.bf16.mxu0 0
      %377 = vmatpush1.bf16.msra.mxu0 %v360
      %378 = vmatprep.subr.bf16.mxu0 0
      %379 = vmatpush1.bf16.msra.mxu0 %v361
      %380 = vmatprep.subr.bf16.mxu0 0
      %381 = vmatpush1.bf16.msra.mxu0 %v362
      %382 = vmatprep.subr.bf16.mxu0 0
      %383 = vmatpush1.bf16.msra.mxu0 %v363
      %384 = vmatprep.subr.bf16.mxu0 0
      %385 = vmatpush1.bf16.msra.mxu0 %v364
      %386 = vmatprep.subr.bf16.mxu0 0
      %387 = vmatpush1.bf16.msra.mxu0 %v365
      %388 = vmatprep.subr.bf16.mxu0 0
      %389 = vmatpush1.bf16.msra.mxu0 %v366
      %390 = vmatprep.subr.bf16.mxu0 0
      %391 = vmatpush1.bf16.msra.mxu0 %v367
      %392 = vmatprep.subr.bf16.mxu0 0
      %393 = vmatpush1.bf16.msra.mxu0 0
      %394 = vmatprep.subr.bf16.mxu0 0
      %395 = vmatpush1.bf16.msra.mxu0 0
      %396 = vmatprep.subr.bf16.mxu0 0
      %397 = vmatpush1.bf16.msra.mxu0 0
      %398 = vmatprep.subr.bf16.mxu0 0
      %399 = vmatpush1.bf16.msra.mxu0 0
      %400 = vmatprep.subr.bf16.mxu0 0
      %401 = vmatpush1.bf16.msra.mxu0 0
      %402 = vmatprep.subr.bf16.mxu0 0
      %403 = vmatpush1.bf16.msra.mxu0 0
      %404 = vmatprep.subr.bf16.mxu0 0
      %405 = vmatpush1.bf16.msra.mxu0 0
      %406 = vmatprep.subr.bf16.mxu0 0
      %407 = vmatpush1.bf16.msra.mxu0 0
      %408 = vmatprep.mubr.bf16.mxu0 0
      %409 = vmatmul.mubr.bf16.gmra.mrb[0].mxu0 %v320
      %v410 = vpop.f32.mrb[0].mxu0
      %v411 = vadd.f32 0.0, %v410
      %v412 = vpop.f32.mrb[0].mxu0
      %v413 = vpop.f32.mrb[0].mxu0
      %v414 = vadd.f32 0.0, %v413
      %v415 = vpop.f32.mrb[0].mxu0
      %416 = vmatprep.mubr.bf16.mxu0 0
      %417 = vmatmul.mubr.bf16.gmra.mrb[0].mxu0 %v321
      %v418 = vpop.f32.mrb[0].mxu0
      %v419 = vadd.f32 0.0, %v418
      %v420 = vpop.f32.mrb[0].mxu0
      %v421 = vpop.f32.mrb[0].mxu0
      %v422 = vadd.f32 0.0, %v421
      %v423 = vpop.f32.mrb[0].mxu0
      %424 = vmatprep.mubr.bf16.mxu0 0
      %425 = vmatmul.mubr.bf16.gmra.mrb[0].mxu0 %v322
      %v426 = vpop.f32.mrb[0].mxu0
      %v427 = vadd.f32 0.0, %v426
      %v428 = vpop.f32.mrb[0].mxu0
      %v429 = vpop.f32.mrb[0].mxu0
      %v430 = vadd.f32 0.0, %v429
      %v431 = vpop.f32.mrb[0].mxu0
      %432 = vmatprep.mubr.bf16.mxu0 0
      %433 = vmatmul.mubr.bf16.gmra.mrb[0].mxu0 %v323
      %v434 = vpop.f32.mrb[0].mxu0
      %v435 = vadd.f32 0.0, %v434
      %v436 = vpop.f32.mrb[0].mxu0
      %v437 = vpop.f32.mrb[0].mxu0
      %v438 = vadd.f32 0.0, %v437
      %v439 = vpop.f32.mrb[0].mxu0
      %440 = vdwg.mxu0
      %v441 = vadd.f32 %v272, %v411
      %v442 = vadd.f32 %v273, %v414
      %v443 = vadd.f32 %v274, %v419
      %v444 = vadd.f32 %v275, %v422
      %v445 = vadd.f32 %v276, %v427
      %v446 = vadd.f32 %v277, %v430
      %v447 = vadd.f32 %v278, %v435
      %v448 = vadd.f32 %v279, %v438
      %449 = vst [vmem:[#allocation2] sm:$0xff] %v441
      %450 = vst [vmem:[#allocation2 + $0x8] sm:$0xff] %v442
      %451 = vst [vmem:[#allocation2 + $0x10] sm:$0xff] %v443
      %452 = vst [vmem:[#allocation2 + $0x18] sm:$0xff] %v444
      %453 = vst [vmem:[#allocation2 + $0x20] sm:$0xff] %v445
      %454 = vst [vmem:[#allocation2 + $0x28] sm:$0xff] %v446
      %455 = vst [vmem:[#allocation2 + $0x30] sm:$0xff] %v447
      %456 = vst [vmem:[#allocation2 + $0x38] sm:$0xff] %v448
      // Predicated region
      $region37: #{conv2d_k3_s2_p1.1} parent=31 // pred_check
        %p457 = pneg %p260
      $region38: #{conv2d_k3_s2_p1.1} parent=31 // pred_check_branch
        %459 = sbr.rel (%p457) target = $region40
      $region39: #{conv2d_k3_s2_p1.1} parent=31 // pred_region
        %v460 = vld [vmem:[#allocation2] sm:$0xff]
        %v461 = vld [vmem:[#allocation2 + $0x8] sm:$0xff]
        %v462 = vld [vmem:[#allocation2 + $0x10] sm:$0xff]
        %v463 = vld [vmem:[#allocation2 + $0x18] sm:$0xff]
        %v464 = vld [vmem:[#allocation2 + $0x20] sm:$0xff]
        %v465 = vld [vmem:[#allocation2 + $0x28] sm:$0xff]
        %v466 = vld [vmem:[#allocation2 + $0x30] sm:$0xff]
        %v467 = vld [vmem:[#allocation2 + $0x38] sm:$0xff]
        %v468 = vld [vmem:[%s249] sm:$0x1]
        %v470 = vlaneseq
        %v471 = vshrl.u32 %v470, 7
        %v472 = vsub.s32 0, %v471
        %v473 = vrot.slane %v468, %v472
        %v475 = vadd.f32 %v460, %v473
        %v476 = vadd.f32 %v461, %v473
        %v477 = vadd.f32 %v462, %v473
        %v478 = vadd.f32 %v463, %v473
        %v479 = vadd.f32 %v464, %v473
        %v480 = vadd.f32 %v465, %v473
        %v481 = vadd.f32 %v466, %v473
        %v482 = vadd.f32 %v467, %v473
        %483 = vst [vmem:[%s257] sm:$0xff] %v475
        %484 = vst [vmem:[%s257 + $0x8] sm:$0xff] %v476
        %485 = vst [vmem:[%s257 + $0x10] sm:$0xff] %v477
        %486 = vst [vmem:[%s257 + $0x18] sm:$0xff] %v478
        %487 = vst [vmem:[%s257 + $0x20] sm:$0xff] %v479
        %488 = vst [vmem:[%s257 + $0x28] sm:$0xff] %v480
        %489 = vst [vmem:[%s257 + $0x30] sm:$0xff] %v481
        %490 = vst [vmem:[%s257 + $0x38] sm:$0xff] %v482
      $region40: #{conv2d_k3_s2_p1.1} parent=31 // pred_fallthru
        _
      %s491 = smul.u32 8, %s19
      %p492 = scmp.lt.s32.totalorder %s491, 15
      %s493 = scalar_select %p492, %s491, 15
      %p494 = scmp.lt.s32.totalorder %s20, 0
      %s495 = scalar_select %p494, %s20, 0
      %s496 = sadd.s32 %s495, %s493
      %s497 = smul.addr %s496, 8
      %s498 = scalar_lea.vmem %s3, %s497
      // Predicated region
      $region41: #{conv2d_k3_s2_p1.1} parent=31 // pred_check
        %p499 = pneg %p135
      $region42: #{conv2d_k3_s2_p1.1} parent=31 // pred_check_branch
        %501 = sbr.rel (%p499) target = $region44
      $region43: #{conv2d_k3_s2_p1.1} parent=31 // pred_region
        %s502 = smul.u32 8, %s19
      $region44: #{conv2d_k3_s2_p1.1} parent=31 // pred_fallthru
        _
    $region32: #{conv2d_k3_s2_p1.1} parent=5 // pred_fallthru
      _
    %p503 = scmp.le.s32.totalorder 2, %s9
    // Predicated region
    $region45: #{conv2d_k3_s2_p1.1} parent=5 // pred_check
      %p504 = pneg %p503
    $region46: #{conv2d_k3_s2_p1.1} parent=5 // pred_check_branch
      %506 = sbr.rel (%p504) target = $region48
    $region47: #{conv2d_k3_s2_p1.1} parent=5 // pred_region
      %s507 = ssub.s32 %s9, 2
      // Predicated region
      $region49: #{conv2d_k3_s2_p1.1} parent=47 // pred_check
        %p508 = pneg %p141
      $region50: #{conv2d_k3_s2_p1.1} parent=47 // pred_check_branch
        %510 = sbr.rel (%p508) target = $region52
      $region51: #{conv2d_k3_s2_p1.1} parent=47 // pred_region
        %s511 = smul.u32 8, %s22
        %p512 = scmp.lt.s32.totalorder %s511, 15
        %s513 = scalar_select %p512, %s511, 15
        %p514 = scmp.lt.s32.totalorder %s23, 0
        %s515 = scalar_select %p514, %s23, 0
        %s516 = sadd.s32 %s515, %s513
        %s517 = smul.addr %s516, 8
        %s518 = scalar_lea.vmem %s3, %s517
      $region52: #{conv2d_k3_s2_p1.1} parent=47 // pred_fallthru
        _
    $region48: #{conv2d_k3_s2_p1.1} parent=5 // pred_fallthru
      _
  $region6: #{conv2d_k3_s2_p1.1} parent=0 // loop_footer
    %s13 = sadd.s32 1, %s9
  $region7: #{conv2d_k3_s2_p1.1} parent=0 // loop_footer_branch
    %8 = sbr.rel target = $region3
  $region8: #{conv2d_k3_s2_p1.1} parent=0 // loop_exit
    _

</llo_original>
